<compile_context>
chip_gen: v7x
topology: tpu7x:2x2x1
jax: 0.10.0
libtpu: 0.0.40
codegen_flags: <defaults>
</compile_context>

<pallas_src>
import functools

import jax
import jax.numpy as jnp
from jax.experimental import pallas as pl
from jax.experimental.pallas import tpu as pltpu

LANES = 128
TILE_ROWS_CAP = 4096   # ~2 MiB per f32 input block


def _rae_loss_kernel(n_ref, real_ref, pred_ref, out_ref,
                     acc_sum_ref, acc_num_ref, acc_den_ref, mean_ref,
                     *, needs_mask):
    ph = pl.program_id(0)        # 0: sum(real) & sum|pred-real| ; 1: sum|real-mean|
    i = pl.program_id(1)         # row-tile index
    last = pl.num_programs(1) - 1

    tile_rows, lanes = real_ref.shape

    @pl.when((ph == 0) & (i == 0))
    def _init():
        acc_sum_ref[...] = jnp.zeros_like(acc_sum_ref)
        acc_num_ref[...] = jnp.zeros_like(acc_num_ref)
        acc_den_ref[...] = jnp.zeros_like(acc_den_ref)

    if needs_mask:
        # Validity mask for lane-pad / partial final tile (garbage rows are
        # replaced by 0 via jnp.where, so stale VMEM never contributes).
        row_ids = jax.lax.broadcasted_iota(jnp.int32, (tile_rows, lanes), 0)
        lane_ids = jax.lax.broadcasted_iota(jnp.int32, (tile_rows, lanes), 1)
        gidx = i * (tile_rows * lanes) + row_ids * lanes + lane_ids
        mask = gidx < n_ref[0]
    else:
        mask = None

    def _masked(v):
        return jnp.where(mask, v, 0.0) if mask is not None else v

    r = real_ref[...].astype(jnp.float32)

    @pl.when(ph == 0)
    def _phase0():
        p = pred_ref[...].astype(jnp.float32)
        acc_sum_ref[...] += jnp.sum(_masked(r), axis=0, keepdims=True)
        acc_num_ref[...] += jnp.sum(_masked(jnp.abs(p - r)), axis=0, keepdims=True)

    @pl.when((ph == 1) & (i == 0))
    def _mean():
        mean_ref[0] = jnp.sum(acc_sum_ref[...]) / n_ref[0].astype(jnp.float32)

    @pl.when(ph == 1)
    def _phase1():
        mu = mean_ref[0]
        acc_den_ref[...] += jnp.sum(_masked(jnp.abs(r - mu)), axis=0, keepdims=True)

    @pl.when((ph == 1) & (i == last))
    def _finalize():
        num = jnp.sum(acc_num_ref[...])
        den = jnp.sum(acc_den_ref[...])
        # Matches the naive PyTorch formula (no epsilon guard on denominator).
        out_ref[0, 0] = num / den


def rae_loss(real, pred):
    """Scalar RAE loss: sum(|pred-real|) / sum(|real-mean(real)|)."""
    assert real.shape == pred.shape
    n = int(real.size)

    def to_slab(x):
        # Keep bf16 streams as bf16 (halves HBM traffic); upcast happens per
        # tile inside the kernel. Anything else goes to f32.
        if x.dtype != jnp.bfloat16:
            x = x.astype(jnp.float32)
        x = x.reshape(-1)
        rows = pl.cdiv(n, LANES)
        pad = rows * LANES - n
        if pad:  # copies only when the flat size is lane-misaligned
            x = jnp.pad(x, (0, pad))
        return x.reshape(rows, LANES)

    real2d = to_slab(real)
    pred2d = to_slab(pred)
    rows = real2d.shape[0]

    # Block = full slab if it is small, else 4096-row (~2 MiB f32) tiles.
    tile_rows = rows if rows <= TILE_ROWS_CAP else TILE_ROWS_CAP
    num_tiles = pl.cdiv(rows, tile_rows)
    needs_mask = (rows * LANES != n) or (rows % tile_rows != 0)

    real_spec = pl.BlockSpec((tile_rows, LANES), lambda ph, i, n_ref: (i, 0))
    # pred is only consumed in phase 0; pin its block index during phase 1 so
    # the pipeline issues no pred DMAs there (keeps phase 1 at 1 stream).
    pred_spec = pl.BlockSpec(
        (tile_rows, LANES),
        lambda ph, i, n_ref: (i * (1 - ph) + (num_tiles - 1) * ph, 0))

    out = pl.pallas_call(
        functools.partial(_rae_loss_kernel, needs_mask=needs_mask),
        out_shape=jax.ShapeDtypeStruct((1, 1), jnp.float32),
        grid_spec=pltpu.PrefetchScalarGridSpec(
            num_scalar_prefetch=1,
            grid=(2, num_tiles),
            in_specs=[real_spec, pred_spec],
            out_specs=pl.BlockSpec((1, 1), lambda ph, i, n_ref: (0, 0),
                                   memory_space=pltpu.SMEM),
            scratch_shapes=[
                pltpu.VMEM((1, LANES), jnp.float32),   # sum(real)
                pltpu.VMEM((1, LANES), jnp.float32),   # sum|pred - real|
                pltpu.VMEM((1, LANES), jnp.float32),   # sum|real - mean|
                pltpu.SMEM((1,), jnp.float32),         # mean(real)
            ]),
        compiler_params=pltpu.CompilerParams(
            dimension_semantics=("arbitrary", "arbitrary")),
    )(jnp.array([n], dtype=jnp.int32), real2d, pred2d)
    return out[0, 0]


if __name__ == "__main__":
    key = jax.random.PRNGKey(0)
    k1, k2 = jax.random.split(key, 2)
    shape = (2, 4, 16, 16)  # NCHW
    real = jax.random.normal(k1, shape, dtype=jnp.float32)
    pred = real + 0.1 * jax.random.normal(k2, shape, dtype=jnp.float32)

    result = rae_loss(real, pred)
    jax.block_until_ready(result)

    # Reference in plain JAX (same semantics as the PyTorch module).
    ref = jnp.sum(jnp.abs(pred - real)) / jnp.sum(jnp.abs(real - jnp.mean(real)))
    assert jnp.allclose(result, ref, rtol=1e-5, atol=1e-6), (result, ref)
    print("KERNEL_OK")
</pallas_src>

<mosaic_0001>
module attributes {stable_mosaic.version = 11 : i64} {
  func.func @_rae_loss_kernel(%arg0: i32, %arg1: i32, %arg2: memref<1xi32, #tpu.memory_space<smem>>, %arg3: memref<16x128xf32, #tpu.memory_space<vmem>>, %arg4: memref<16x128xf32, #tpu.memory_space<vmem>>, %arg5: memref<1x1xf32, #tpu.memory_space<smem>>, %arg6: memref<1x128xf32, #tpu.memory_space<vmem>>, %arg7: memref<1x128xf32, #tpu.memory_space<vmem>>, %arg8: memref<1x128xf32, #tpu.memory_space<vmem>>, %arg9: memref<1xf32, #tpu.memory_space<smem>>) attributes {dimension_semantics = [#tpu.dimension_semantics<arbitrary>, #tpu.dimension_semantics<arbitrary>], iteration_bounds = array<i64: 2, 1>, scalar_prefetch = 1 : i64, scratch_operands = 4 : i64, tpu.core_type = #tpu.core_type<tc>, window_params = [{transform_indices = @transform_0, window_bounds = array<i64: 16, 128>}, {transform_indices = @transform_1, window_bounds = array<i64: 16, 128>}, {transform_indices = @transform_2, window_bounds = array<i64: 1, 1>}]} {
    %c0_i32 = arith.constant 0 : i32
    %0 = arith.cmpi eq, %arg0, %c0_i32 : i32
    %c0_i32_0 = arith.constant 0 : i32
    %1 = arith.cmpi eq, %arg1, %c0_i32_0 : i32
    %2 = arith.andi %0, %1 : i1
    %3 = arith.extui %2 : i1 to i32
    %c0_i32_1 = arith.constant 0 : i32
    %4 = arith.cmpi ne, %3, %c0_i32_1 : i32
    scf.if %4 {
      %cst = arith.constant 0.000000e+00 : f32
      %22 = vector.broadcast %cst : f32 to vector<1x128xf32>
      %c0_12 = arith.constant 0 : index
      %c0_13 = arith.constant 0 : index
      %23 = vector.load %arg6[%c0_12, %c0_13] : memref<1x128xf32, #tpu.memory_space<vmem>>, vector<1x128xf32>
      tpu.vector_store %arg6[%c0_12, %c0_13], %22 {strides = array<i32>} : memref<1x128xf32, #tpu.memory_space<vmem>>, vector<1x128xf32>,
      %cst_14 = arith.constant 0.000000e+00 : f32
      %24 = vector.broadcast %cst_14 : f32 to vector<1x128xf32>
      %c0_15 = arith.constant 0 : index
      %c0_16 = arith.constant 0 : index
      %25 = vector.load %arg7[%c0_15, %c0_16] : memref<1x128xf32, #tpu.memory_space<vmem>>, vector<1x128xf32>
      tpu.vector_store %arg7[%c0_15, %c0_16], %24 {strides = array<i32>} : memref<1x128xf32, #tpu.memory_space<vmem>>, vector<1x128xf32>,
      %cst_17 = arith.constant 0.000000e+00 : f32
      %26 = vector.broadcast %cst_17 : f32 to vector<1x128xf32>
      %c0_18 = arith.constant 0 : index
      %c0_19 = arith.constant 0 : index
      %27 = vector.load %arg8[%c0_18, %c0_19] : memref<1x128xf32, #tpu.memory_space<vmem>>, vector<1x128xf32>
      tpu.vector_store %arg8[%c0_18, %c0_19], %26 {strides = array<i32>} : memref<1x128xf32, #tpu.memory_space<vmem>>, vector<1x128xf32>,
    } else {
    }
    %c0 = arith.constant 0 : index
    %c0_2 = arith.constant 0 : index
    %5 = vector.load %arg3[%c0, %c0_2] : memref<16x128xf32, #tpu.memory_space<vmem>>, vector<16x128xf32>
    %c0_i32_3 = arith.constant 0 : i32
    %6 = arith.cmpi eq, %arg0, %c0_i32_3 : i32
    %7 = arith.extui %6 : i1 to i32
    %c0_i32_4 = arith.constant 0 : i32
    %8 = arith.cmpi ne, %7, %c0_i32_4 : i32
    scf.if %8 {
      %c0_12 = arith.constant 0 : index
      %c0_13 = arith.constant 0 : index
      %22 = vector.load %arg4[%c0_12, %c0_13] : memref<16x128xf32, #tpu.memory_space<vmem>>, vector<16x128xf32>
      %c0_14 = arith.constant 0 : index
      %c0_15 = arith.constant 0 : index
      %23 = vector.load %arg6[%c0_14, %c0_15] : memref<1x128xf32, #tpu.memory_space<vmem>>, vector<1x128xf32>
      %cst = arith.constant dense<0.000000e+00> : vector<128xf32>
      %24 = vector.multi_reduction <add>, %5, %cst [0] : vector<16x128xf32> to vector<128xf32>
      %25 = vector.shape_cast %24 : vector<128xf32> to vector<1x128xf32>
      %26 = arith.addf %23, %25 : vector<1x128xf32>
      %c0_16 = arith.constant 0 : index
      %c0_17 = arith.constant 0 : index
      %27 = vector.load %arg6[%c0_16, %c0_17] : memref<1x128xf32, #tpu.memory_space<vmem>>, vector<1x128xf32>
      tpu.vector_store %arg6[%c0_16, %c0_17], %26 {strides = array<i32>} : memref<1x128xf32, #tpu.memory_space<vmem>>, vector<1x128xf32>,
      %c0_18 = arith.constant 0 : index
      %c0_19 = arith.constant 0 : index
      %28 = vector.load %arg7[%c0_18, %c0_19] : memref<1x128xf32, #tpu.memory_space<vmem>>, vector<1x128xf32>
      %29 = arith.subf %22, %5 : vector<16x128xf32>
      %30 = math.absf %29 : vector<16x128xf32>
      %cst_20 = arith.constant dense<0.000000e+00> : vector<128xf32>
      %31 = vector.multi_reduction <add>, %30, %cst_20 [0] : vector<16x128xf32> to vector<128xf32>
      %32 = vector.shape_cast %31 : vector<128xf32> to vector<1x128xf32>
      %33 = arith.addf %28, %32 : vector<1x128xf32>
      %c0_21 = arith.constant 0 : index
      %c0_22 = arith.constant 0 : index
      %34 = vector.load %arg7[%c0_21, %c0_22] : memref<1x128xf32, #tpu.memory_space<vmem>>, vector<1x128xf32>
      tpu.vector_store %arg7[%c0_21, %c0_22], %33 {strides = array<i32>} : memref<1x128xf32, #tpu.memory_space<vmem>>, vector<1x128xf32>,
    } else {
    }
    %c1_i32 = arith.constant 1 : i32
    %9 = arith.cmpi eq, %arg0, %c1_i32 : i32
    %c0_i32_5 = arith.constant 0 : i32
    %10 = arith.cmpi eq, %arg1, %c0_i32_5 : i32
    %11 = arith.andi %9, %10 : i1
    %12 = arith.extui %11 : i1 to i32
    %c0_i32_6 = arith.constant 0 : i32
    %13 = arith.cmpi ne, %12, %c0_i32_6 : i32
    scf.if %13 {
      %c0_12 = arith.constant 0 : index
      %c0_13 = arith.constant 0 : index
      %22 = vector.load %arg6[%c0_12, %c0_13] : memref<1x128xf32, #tpu.memory_space<vmem>>, vector<1x128xf32>
      %23 = vector.shape_cast %22 : vector<1x128xf32> to vector<1x1x128xf32>
      %cst = arith.constant dense<0.000000e+00> : vector<1xf32>
      %24 = vector.multi_reduction <add>, %23, %cst [1, 2] : vector<1x1x128xf32> to vector<1xf32>
      %25 = vector.shape_cast %24 : vector<1xf32> to vector<1x1x1xf32>
      %26 = vector.extract %25[0, 0, 0] : f32 from vector<1x1x1xf32>
      %c0_14 = arith.constant 0 : index
      %27 = memref.load %arg2[%c0_14] : memref<1xi32, #tpu.memory_space<smem>>
      %28 = arith.sitofp %27 : i32 to f32
      %29 = arith.divf %26, %28 : f32
      %c0_15 = arith.constant 0 : index
      %30 = memref.load %arg9[%c0_15] : memref<1xf32, #tpu.memory_space<smem>>
      memref.store %29, %arg9[%c0_15] : memref<1xf32, #tpu.memory_space<smem>>
    } else {
    }
    %c1_i32_7 = arith.constant 1 : i32
    %14 = arith.cmpi eq, %arg0, %c1_i32_7 : i32
    %15 = arith.extui %14 : i1 to i32
    %c0_i32_8 = arith.constant 0 : i32
    %16 = arith.cmpi ne, %15, %c0_i32_8 : i32
    scf.if %16 {
      %c0_12 = arith.constant 0 : index
      %22 = memref.load %arg9[%c0_12] : memref<1xf32, #tpu.memory_space<smem>>
      %c0_13 = arith.constant 0 : index
      %c0_14 = arith.constant 0 : index
      %23 = vector.load %arg8[%c0_13, %c0_14] : memref<1x128xf32, #tpu.memory_space<vmem>>, vector<1x128xf32>
      %24 = vector.broadcast %22 : f32 to vector<16x128xf32>
      %25 = arith.subf %5, %24 : vector<16x128xf32>
      %26 = math.absf %25 : vector<16x128xf32>
      %cst = arith.constant dense<0.000000e+00> : vector<128xf32>
      %27 = vector.multi_reduction <add>, %26, %cst [0] : vector<16x128xf32> to vector<128xf32>
      %28 = vector.shape_cast %27 : vector<128xf32> to vector<1x128xf32>
      %29 = arith.addf %23, %28 : vector<1x128xf32>
      %c0_15 = arith.constant 0 : index
      %c0_16 = arith.constant 0 : index
      %30 = vector.load %arg8[%c0_15, %c0_16] : memref<1x128xf32, #tpu.memory_space<vmem>>, vector<1x128xf32>
      tpu.vector_store %arg8[%c0_15, %c0_16], %29 {strides = array<i32>} : memref<1x128xf32, #tpu.memory_space<vmem>>, vector<1x128xf32>,
    } else {
    }
    %c1_i32_9 = arith.constant 1 : i32
    %17 = arith.cmpi eq, %arg0, %c1_i32_9 : i32
    %c0_i32_10 = arith.constant 0 : i32
    %18 = arith.cmpi eq, %arg1, %c0_i32_10 : i32
    %19 = arith.andi %17, %18 : i1
    %20 = arith.extui %19 : i1 to i32
    %c0_i32_11 = arith.constant 0 : i32
    %21 = arith.cmpi ne, %20, %c0_i32_11 : i32
    scf.if %21 {
      %c0_12 = arith.constant 0 : index
      %c0_13 = arith.constant 0 : index
      %22 = vector.load %arg7[%c0_12, %c0_13] : memref<1x128xf32, #tpu.memory_space<vmem>>, vector<1x128xf32>
      %23 = vector.shape_cast %22 : vector<1x128xf32> to vector<1x1x128xf32>
      %cst = arith.constant dense<0.000000e+00> : vector<1xf32>
      %24 = vector.multi_reduction <add>, %23, %cst [1, 2] : vector<1x1x128xf32> to vector<1xf32>
      %25 = vector.shape_cast %24 : vector<1xf32> to vector<1x1x1xf32>
      %26 = vector.extract %25[0, 0, 0] : f32 from vector<1x1x1xf32>
      %c0_14 = arith.constant 0 : index
      %c0_15 = arith.constant 0 : index
      %27 = vector.load %arg8[%c0_14, %c0_15] : memref<1x128xf32, #tpu.memory_space<vmem>>, vector<1x128xf32>
      %28 = vector.shape_cast %27 : vector<1x128xf32> to vector<1x1x128xf32>
      %cst_16 = arith.constant dense<0.000000e+00> : vector<1xf32>
      %29 = vector.multi_reduction <add>, %28, %cst_16 [1, 2] : vector<1x1x128xf32> to vector<1xf32>
      %30 = vector.shape_cast %29 : vector<1xf32> to vector<1x1x1xf32>
      %31 = vector.extract %30[0, 0, 0] : f32 from vector<1x1x1xf32>
      %32 = arith.divf %26, %31 : f32
      %c0_17 = arith.constant 0 : index
      %c0_18 = arith.constant 0 : index
      %33 = memref.load %arg5[%c0_17, %c0_18] : memref<1x1xf32, #tpu.memory_space<smem>>
      memref.store %32, %arg5[%c0_17, %c0_18] : memref<1x1xf32, #tpu.memory_space<smem>>
    } else {
    }
    return
  }
  func.func @transform_0(%arg0: i32, %arg1: i32, %arg2: memref<1xi32, #tpu.memory_space<smem>>) -> (i32, i32) {
    %c0_i32 = arith.constant 0 : i32
    %c0_i32_0 = arith.constant 0 : i32
    return %arg1, %c0_i32 : i32, i32
  }
  func.func @transform_1(%arg0: i32, %arg1: i32, %arg2: memref<1xi32, #tpu.memory_space<smem>>) -> (i32, i32) {
    %c1_i32 = arith.constant 1 : i32
    %0 = arith.subi %c1_i32, %arg0 : i32
    %1 = arith.muli %arg1, %0 : i32
    %c0_i32 = arith.constant 0 : i32
    %2 = arith.muli %c0_i32, %arg0 : i32
    %3 = arith.addi %1, %2 : i32
    %c0_i32_0 = arith.constant 0 : i32
    %c0_i32_1 = arith.constant 0 : i32
    return %3, %c0_i32_0 : i32, i32
  }
  func.func @transform_2(%arg0: i32, %arg1: i32, %arg2: memref<1xi32, #tpu.memory_space<smem>>) -> (i32, i32) {
    %c0_i32 = arith.constant 0 : i32
    %c0_i32_0 = arith.constant 0 : i32
    %c0_i32_1 = arith.constant 0 : i32
    return %c0_i32, %c0_i32_0 : i32, i32
  }
}

</mosaic_0001>

<llo_original>
// kernel: tpu_custom_call.1
$region0: #{tpu_custom_call.1}
  #allocation0 [shape = 'u32[]', space=smem, size = 0x4, offset = 0x4, fixed_abs, tag = 'smem constant byte address 0x4 - core index']
  #allocation1 [shape = 'u32[144,128]{1,0:T(1,128)}', space=vmem, size = 0x12000, scoped, tag = 'internal scratch']
  #allocation2 [shape = 'f32[1,128]{1,0:T(1,128)}', space=vmem, size = 0x200, scoped, tag = 'scratch operand']
  #allocation3 [shape = 'f32[1,128]{1,0:T(1,128)}', space=vmem, size = 0x200, scoped, tag = 'scratch operand']
  #allocation4 [shape = 'f32[1,128]{1,0:T(1,128)}', space=vmem, size = 0x200, scoped, tag = 'scratch operand']
  #allocation5 [shape = 'f32[1]{0:T(128)}', space=smem, size = 0x200, scoped, tag = 'scratch operand']
  #allocation6 [shape = 's32[1]{0}', space=sflag, size = 0x4, scoped, tag = 'scoped memory for tpu_custom_call.1']
  #allocation7 [shape = 's32[1]{0:T(128)S(6)}', space=smem, size = 0x200, scoped, tag = 'prefetched SMEM operand 0']
  %s0 = inlined_call_operand.<no memory space> [shape: s32[1], index: 0, kind: input, shape index: {}]
  %s1 = inlined_call_operand.hbm [shape: f32[16,128], index: 1, kind: input, shape index: {}]
  %s2 = inlined_call_operand.hbm [shape: f32[16,128], index: 2, kind: input, shape index: {}]
  %s3 = inlined_call_operand.hbm [shape: f32[1,1], index: 3, kind: output, shape index: {}]
  %s4 = sld [smem:[#allocation0]]
  $region69: #{tpu_custom_call.1} parent=0
    _
  %s6 = ssub.s32 1, %s4
  %s7 = scalar_select 0, %s6, %s4
  %8 = sst [smem:[#allocation7]] %s0
  $region1: #{tpu_custom_call.1} parent=0
    #allocation8 [shape = 'u8[8192]{0}', space=vmem, size = 0x2000, scoped, tag = 'input window, operand 1, single buffered']
    #allocation9 [shape = 's32[2]{0}', space=sflag, size = 0x8, scoped, tag = 'scoped memory for tpu_custom_call.1']
    #allocation10 [shape = 's32[2]{0}', space=sflag, size = 0x8, scoped, tag = 'scoped memory for tpu_custom_call.1']
    #allocation11 [shape = 'u8[16384]{0}', space=vmem, size = 0x4000, scoped, tag = 'input window, operand 2']
    #allocation12 [shape = 's32[2]{0}', space=sflag, size = 0x8, scoped, tag = 'scoped memory for tpu_custom_call.1']
    #allocation13 [shape = 'u8[512]{0}', space=smem, size = 0x200, scoped, tag = 'output window, operand 0, single buffered']
    %9 = vsyncpa [#allocation9], 0
    %10 = vsyncpa [#allocation12], 0
    %s11 = scalar_lea.sflag [#allocation12], 1
    %12 = vsyncpa %s11, 0
    %13 = vsyncpa [#allocation10], 0
    loop: start=0, step=1, limit=4
    $region2: #{tpu_custom_call.1} parent=1 // loop_pre_header
      _
    $region3: #{tpu_custom_call.1} parent=1 // loop_header
      %s15 = sphi 0, %s19
      %p16 = scmp.ge.s32.totalorder %s15, 4
      %s22 = sphi 0, %s34
      %s23 = sphi 0, %s30
      %s24 = sphi 0, %s22
      %s25 = sphi 0, %s23
      %s26 = sphi 0, %s24
      %s27 = sphi 0, %s25
      %s37 = sphi 0, %s39
      %s40 = sphi 0, %s37
      %s41 = sphi 0, %s40
      %s57 = sphi 0, %s41
      %s67 = sphi 0, %s69
      %s70 = sphi 0, %s67
      %s71 = sphi 0, %s70
      %s87 = sphi 0, %s71
      %s91 = sphi 0, %s91
      %s93 = sphi 0, %s91
      %s94 = sphi 0, %s93
      %s108 = sphi 0, %s94
    $region4: #{tpu_custom_call.1} parent=1 // loop_header_branch
      %18 = sbr.rel (%p16) target = $region8
    $region5: #{tpu_custom_call.1} parent=1 // loop_body
      %s20 = ssub.s32 %s15, 1
      %s21 = ssub.s32 %s15, 2
      %s28 = sadd.s32 1, %s23
      %p29 = scmp.ge.s32.totalorder %s28, 1
      %s30 = scalar_select %p29, 0, %s28
      %s31 = sadd.s32 1, %s22
      %s32 = scalar_select %p29, %s31, %s22
      %p33 = scmp.ge.s32.totalorder %s32, 2
      %s34 = scalar_select %p33, 0, %s32
      %s35 = ssub.s32 %s23, %s30
      %p36 = scmp.eq.s32.totalorder %s35, 0
      %s38 = sadd.s32 %s37, 1
      %s39 = scalar_select %p36, %s37, %s38
      %p42 = pneg %p36
      %p43 = scmp.eq.s32.totalorder %s15, 1
      %p44 = por %p42, %p43
      %p45 = scmp.ne.s32.totalorder %s37, %s40
      %p46 = scmp.eq.s32.totalorder %s15, 0
      %p47 = por %p45, %p46
      %p48 = scmp.ne.s32.totalorder %s37, %s40
      %p49 = scmp.eq.s32.totalorder %s20, 1
      %p50 = por %p48, %p49
      %p51 = scmp.ne.s32.totalorder %s40, %s41
      %p52 = scmp.eq.s32.totalorder %s20, 0
      %p53 = por %p51, %p52
      %p54 = scmp.ne.s32.totalorder %s40, %s41
      %p55 = scmp.eq.s32.totalorder %s21, 1
      %p56 = por %p54, %p55
      %p58 = scmp.ne.s32.totalorder %s41, %s57
      %p59 = scmp.eq.s32.totalorder %s21, 0
      %p60 = por %p58, %p59
      %s61 = ssub.s32 1, %s22
      %s62 = smul.u32 %s23, %s61
      %s63 = ssub.s32 1, %s34
      %s64 = smul.u32 %s30, %s63
      %s65 = ssub.s32 %s62, %s64
      %p66 = scmp.eq.s32.totalorder %s65, 0
      %s68 = sadd.s32 %s67, 1
      %s69 = scalar_select %p66, %s67, %s68
      %p72 = pneg %p66
      %p73 = scmp.eq.s32.totalorder %s15, 1
      %p74 = por %p72, %p73
      %p75 = scmp.ne.s32.totalorder %s67, %s70
      %p76 = scmp.eq.s32.totalorder %s15, 0
      %p77 = por %p75, %p76
      %p78 = scmp.ne.s32.totalorder %s67, %s70
      %p79 = scmp.eq.s32.totalorder %s20, 1
      %p80 = por %p78, %p79
      %p81 = scmp.ne.s32.totalorder %s70, %s71
      %p82 = scmp.eq.s32.totalorder %s20, 0
      %p83 = por %p81, %p82
      %p84 = scmp.ne.s32.totalorder %s70, %s71
      %p85 = scmp.eq.s32.totalorder %s21, 1
      %p86 = por %p84, %p85
      %p88 = scmp.ne.s32.totalorder %s71, %s87
      %p89 = scmp.eq.s32.totalorder %s21, 0
      %p90 = por %p88, %p89
      %s92 = sadd.s32 %s91, 1
      %p95 = scmp.eq.s32.totalorder %s15, 1
      %p96 = scmp.ne.s32.totalorder %s91, %s93
      %p97 = scmp.eq.s32.totalorder %s15, 0
      %p98 = por %p96, %p97
      %p99 = scmp.ne.s32.totalorder %s91, %s93
      %p100 = scmp.eq.s32.totalorder %s20, 1
      %p101 = por %p99, %p100
      %p102 = scmp.ne.s32.totalorder %s93, %s94
      %p103 = scmp.eq.s32.totalorder %s20, 0
      %p104 = por %p102, %p103
      %p105 = scmp.ne.s32.totalorder %s93, %s94
      %p106 = scmp.eq.s32.totalorder %s21, 1
      %p107 = por %p105, %p106
      %p109 = scmp.ne.s32.totalorder %s94, %s108
      %p110 = scmp.eq.s32.totalorder %s21, 0
      %p111 = por %p109, %p110
      %p112 = scmp.le.s32.totalorder 1, %s15
      %p113 = scmp.lt.s32.totalorder %s15, 3
      %p114 = pnand %p112, %p113
      %p115 = pneg %p114
      // Predicated region
      $region9: #{tpu_custom_call.1} parent=5 // pred_check
        _
      $region10: #{tpu_custom_call.1} parent=5 // pred_check_branch
        %117 = sbr.rel (%p114) target = $region12
      $region11: #{tpu_custom_call.1} parent=5 // pred_region
        %s118 = ssub.s32 %s15, 1
        // Predicated region
        $region13: #{tpu_custom_call.1} parent=11 // pred_check
          %p119 = pneg %p53
        $region14: #{tpu_custom_call.1} parent=11 // pred_check_branch
          %121 = sbr.rel (%p119) target = $region16
        $region15: #{tpu_custom_call.1} parent=11 // pred_region
          %s122 = smul.u32 2, %s25
          %s124 = ssub.s32 256, 256
          %125 = vsyncadd [#allocation9], %s124
          %s126 = smul.addr %s122, 128
          %s127 = scalar_lea.hbm %s1, %s126
          %s128 = sshll.u32 [#allocation8], 4
          %s129 = int_to_ptr.vmem [resolvable:$true] %s128
          %134 = dma.hbm_to_vmem [thread:$0]  %s127, 256, %s129, [#allocation9], 128, 128, 8
        $region16: #{tpu_custom_call.1} parent=11 // pred_fallthru
          _
      $region12: #{tpu_custom_call.1} parent=5 // pred_fallthru
        _
      %p135 = scmp.lt.s32.totalorder %s15, 2
      // Predicated region
      $region17: #{tpu_custom_call.1} parent=5 // pred_check
        %p136 = pneg %p135
      $region18: #{tpu_custom_call.1} parent=5 // pred_check_branch
        %138 = sbr.rel (%p136) target = $region20
      $region19: #{tpu_custom_call.1} parent=5 // pred_region
        // Predicated region
        $region21: #{tpu_custom_call.1} parent=19 // pred_check
          %p139 = pneg %p77
        $region22: #{tpu_custom_call.1} parent=19 // pred_check_branch
          %141 = sbr.rel (%p139) target = $region24
        $region23: #{tpu_custom_call.1} parent=19 // pred_region
          %s142 = sand.u32 %s67, 1
          %s143 = scalar_lea.sflag [#allocation12], %s142
          %s144 = sand.u32 %s67, 1
          %s145 = smul.addr %s144, 16
          %s146 = scalar_lea.vmem [#allocation11], %s145
          %s147 = ssub.s32 1, %s22
          %s148 = smul.u32 %s23, %s147
          %s149 = smul.u32 2, %s148
          %s151 = ssub.s32 256, 256
          %152 = vsyncadd %s143, %s151
          %s153 = smul.addr %s149, 128
          %s154 = scalar_lea.hbm %s2, %s153
          %s155 = sshll.u32 %s146, 4
          %s156 = int_to_ptr.vmem [resolvable:$true] %s155
          %161 = dma.hbm_to_vmem [thread:$0]  %s154, 256, %s156, %s143, 128, 128, 8
        $region24: #{tpu_custom_call.1} parent=19 // pred_fallthru
          _
      $region20: #{tpu_custom_call.1} parent=5 // pred_fallthru
        _
      %p162 = scmp.le.s32.totalorder 1, %s15
      %p163 = scmp.lt.s32.totalorder %s15, 3
      %p164 = pnand %p162, %p163
      %p165 = pneg %p164
      // Predicated region
      $region25: #{tpu_custom_call.1} parent=5 // pred_check
        _
      $region26: #{tpu_custom_call.1} parent=5 // pred_check_branch
        %167 = sbr.rel (%p164) target = $region28
      $region27: #{tpu_custom_call.1} parent=5 // pred_region
        %s168 = ssub.s32 %s15, 1
        // Predicated region
        $region29: #{tpu_custom_call.1} parent=27 // pred_check
          %p169 = pneg %p53
        $region30: #{tpu_custom_call.1} parent=27 // pred_check_branch
          %171 = sbr.rel (%p169) target = $region32
        $region31: #{tpu_custom_call.1} parent=27 // pred_region
          %172 = dma.done [#allocation9], 256
        $region32: #{tpu_custom_call.1} parent=27 // pred_fallthru
          _
        %s173 = sand.u32 %s70, 1
        %s174 = scalar_lea.sflag [#allocation12], %s173
        %s175 = sand.u32 %s70, 1
        %s176 = smul.addr %s175, 16
        %s177 = scalar_lea.vmem [#allocation11], %s176
        // Predicated region
        $region33: #{tpu_custom_call.1} parent=27 // pred_check
          %p178 = pneg %p83
        $region34: #{tpu_custom_call.1} parent=27 // pred_check_branch
          %180 = sbr.rel (%p178) target = $region36
        $region35: #{tpu_custom_call.1} parent=27 // pred_region
          %181 = dma.done %s174, 256
        $region36: #{tpu_custom_call.1} parent=27 // pred_fallthru
          _
        %p182 = pneg %p53
        %p183 = pneg %p50
        %s184 = sand.u32 %s70, 1
        %s185 = scalar_lea.sflag [#allocation12], %s184
        %s186 = sand.u32 %s70, 1
        %s187 = smul.addr %s186, 16
        %s188 = scalar_lea.vmem [#allocation11], %s187
        %p189 = pneg %p83
        %p190 = pneg %p80
        %p191 = pneg %p104
        %p192 = pneg %p101
        %s193 = smul.u32 2, %s25
        %s194 = ssub.s32 1, %s24
        %s195 = smul.u32 %s25, %s194
        %s196 = smul.u32 2, %s195
        %p197 = scmp.eq.s32.totalorder %s24, 0
        %p198 = scmp.eq.s32.totalorder %s25, 0
        %p199 = pnand %p197, %p198
        %p200 = pneg %p199
        // Predicated region
        $region37: #{tpu_custom_call.1} parent=27 // pred_check
          _
        $region38: #{tpu_custom_call.1} parent=27 // pred_check_branch
          %202 = sbr.rel (%p199) target = $region40
        $region39: #{tpu_custom_call.1} parent=27 // pred_region
          %203 = vst [vmem:[#allocation2] sm:$0x1] 0.0
          %204 = vst [vmem:[#allocation3] sm:$0x1] 0.0
          %205 = vst [vmem:[#allocation4] sm:$0x1] 0.0
        $region40: #{tpu_custom_call.1} parent=27 // pred_fallthru
          _
        %v206 = vld [vmem:[#allocation8] sm:$0xff]
        %v207 = vld [vmem:[#allocation8 + $0x8] sm:$0xff]
        // Predicated region
        $region41: #{tpu_custom_call.1} parent=27 // pred_check
          %p208 = pneg %p197
        $region42: #{tpu_custom_call.1} parent=27 // pred_check_branch
          %210 = sbr.rel (%p208) target = $region44
        $region43: #{tpu_custom_call.1} parent=27 // pred_region
          %v211 = vld [vmem:[%s177] sm:$0xff]
          %v212 = vld [vmem:[%s177 + $0x8] sm:$0xff]
          %v213 = vld [vmem:[#allocation2] sm:$0x1]
          %v214 = vadd.f32 %v206, %v207
          %v215 = vrot.slane %v214, 4
          %v216 = vadd.f32 %v214, %v215
          %v217 = vrot.slane %v216, 2
          %v218 = vadd.f32 %v216, %v217
          %v219 = vrot.slane %v218, 1
          %v220 = vadd.f32 %v218, %v219
          %v221 = vadd.f32 %v213, %v220
          %222 = vst [vmem:[#allocation2] sm:$0x1] %v221
          %v223 = vld [vmem:[#allocation3] sm:$0x1]
          %v224 = vsub.f32 %v211, %v206
          %v225 = vsub.f32 %v212, %v207
          %v226 = vand.u32 2147483647, %v224
          %v227 = vand.u32 2147483647, %v225
          %v228 = vadd.f32 %v226, %v227
          %v229 = vrot.slane %v228, 4
          %v230 = vadd.f32 %v228, %v229
          %v231 = vrot.slane %v230, 2
          %v232 = vadd.f32 %v230, %v231
          %v233 = vrot.slane %v232, 1
          %v234 = vadd.f32 %v232, %v233
          %v235 = vadd.f32 %v223, %v234
          %236 = vst [vmem:[#allocation3] sm:$0x1] %v235
        $region44: #{tpu_custom_call.1} parent=27 // pred_fallthru
          _
        %p237 = scmp.eq.s32.totalorder %s24, 1
        %p238 = pnand %p237, %p198
        %p239 = pneg %p238
        // Predicated region
        $region45: #{tpu_custom_call.1} parent=27 // pred_check
          _
        $region46: #{tpu_custom_call.1} parent=27 // pred_check_branch
          %241 = sbr.rel (%p238) target = $region48
        $region47: #{tpu_custom_call.1} parent=27 // pred_region
          %v242 = vld [vmem:[#allocation2] sm:$0x1]
          %vm243 = vcmask 1040384
          %v244 = vsel %vm243, %v242, 0.0
          %245 = vadd.xlane.f32.xlu0 %v244
          %v246 = vpop.xlane.xlu0 %245
          %v247 = vrot.slane %v246, 4
          %v248 = vadd.f32 %v246, %v247
          %v249 = vrot.slane %v248, 2
          %v250 = vadd.f32 %v248, %v249
          %v251 = vrot.slane %v250, 1
          %v252 = vadd.f32 %v250, %v251
          %s253 = vtos %v252
          %s254 = sld [smem:[#allocation7]]
          %s255 = scvt.s32.f32 %s254
          %v256 = vstv %s255
          %v257 = vrcp.pop %v256
          %s258 = vtos %v257
          %s259 = smul.f32 %s253, %s258
          %s260 = scalar_lea.smem [#allocation5], 0
          %261 = sst [smem:[%s260]] %s259
        $region48: #{tpu_custom_call.1} parent=27 // pred_fallthru
          _
        // Predicated region
        $region49: #{tpu_custom_call.1} parent=27 // pred_check
          %p262 = pneg %p237
        $region50: #{tpu_custom_call.1} parent=27 // pred_check_branch
          %264 = sbr.rel (%p262) target = $region52
        $region51: #{tpu_custom_call.1} parent=27 // pred_region
          %s265 = sld [smem:[#allocation5]]
          %v266 = vld [vmem:[#allocation4] sm:$0x1]
          %v267 = vstv %s265
          %v268 = vsub.f32 %v206, %v267
          %v269 = vsub.f32 %v207, %v267
          %v270 = vand.u32 2147483647, %v268
          %v271 = vand.u32 2147483647, %v269
          %v272 = vadd.f32 %v270, %v271
          %v273 = vrot.slane %v272, 4
          %v274 = vadd.f32 %v272, %v273
          %v275 = vrot.slane %v274, 2
          %v276 = vadd.f32 %v274, %v275
          %v277 = vrot.slane %v276, 1
          %v278 = vadd.f32 %v276, %v277
          %v279 = vadd.f32 %v266, %v278
          %280 = vst [vmem:[#allocation4] sm:$0x1] %v279
        $region52: #{tpu_custom_call.1} parent=27 // pred_fallthru
          _
        // Predicated region
        $region53: #{tpu_custom_call.1} parent=27 // pred_check
          _
        $region54: #{tpu_custom_call.1} parent=27 // pred_check_branch
          %282 = sbr.rel (%p238) target = $region56
        $region55: #{tpu_custom_call.1} parent=27 // pred_region
          %v283 = vld [vmem:[#allocation3] sm:$0x1]
          %vm284 = vcmask 1040384
          %v285 = vsel %vm284, %v283, 0.0
          %286 = vadd.xlane.f32.xlu0 %v285
          %v287 = vpop.xlane.xlu0 %286
          %v288 = vrot.slane %v287, 4
          %v289 = vadd.f32 %v287, %v288
          %v290 = vrot.slane %v289, 2
          %v291 = vadd.f32 %v289, %v290
          %v292 = vrot.slane %v291, 1
          %v293 = vadd.f32 %v291, %v292
          %s294 = vtos %v293
          %v295 = vld [vmem:[#allocation4] sm:$0x1]
          %v296 = vsel %vm284, %v295, 0.0
          %297 = vadd.xlane.f32.xlu0 %v296
          %v298 = vpop.xlane.xlu0 %297
          %v299 = vrot.slane %v298, 4
          %v300 = vadd.f32 %v298, %v299
          %v301 = vrot.slane %v300, 2
          %v302 = vadd.f32 %v300, %v301
          %v303 = vrot.slane %v302, 1
          %v304 = vadd.f32 %v302, %v303
          %s305 = vtos %v304
          %v306 = vstv %s305
          %v307 = vrcp.pop %v306
          %s308 = vtos %v307
          %s309 = smul.f32 %s294, %s308
          %s310 = scalar_lea.smem [#allocation13], 0
          %311 = sst [smem:[%s310]] %s309
        $region56: #{tpu_custom_call.1} parent=27 // pred_fallthru
          _
        // Predicated region
        $region57: #{tpu_custom_call.1} parent=27 // pred_check
          %p312 = pneg %p101
        $region58: #{tpu_custom_call.1} parent=27 // pred_check_branch
          %314 = sbr.rel (%p312) target = $region60
        $region59: #{tpu_custom_call.1} parent=27 // pred_region
          %s316 = ssub.s32 16, 16
          %317 = vsyncadd [#allocation10], %s316
          %320 = dma.smem_to_hbm [#allocation13], 16, %s3, [#allocation10]
        $region60: #{tpu_custom_call.1} parent=27 // pred_fallthru
          _
        // Predicated region
        $region61: #{tpu_custom_call.1} parent=27 // pred_check
          %p321 = pneg %p101
        $region62: #{tpu_custom_call.1} parent=27 // pred_check_branch
          %323 = sbr.rel (%p321) target = $region64
        $region63: #{tpu_custom_call.1} parent=27 // pred_region
          %324 = dma.done [#allocation10], 16
        $region64: #{tpu_custom_call.1} parent=27 // pred_fallthru
          _
        %325 = sfence
      $region28: #{tpu_custom_call.1} parent=5 // pred_fallthru
        _
      %p326 = scmp.le.s32.totalorder 2, %s15
      // Predicated region
      $region65: #{tpu_custom_call.1} parent=5 // pred_check
        %p327 = pneg %p326
      $region66: #{tpu_custom_call.1} parent=5 // pred_check_branch
        %329 = sbr.rel (%p327) target = $region68
      $region67: #{tpu_custom_call.1} parent=5 // pred_region
        %s330 = ssub.s32 %s15, 2
      $region68: #{tpu_custom_call.1} parent=5 // pred_fallthru
        _
    $region6: #{tpu_custom_call.1} parent=1 // loop_footer
      %s19 = sadd.s32 1, %s15
    $region7: #{tpu_custom_call.1} parent=1 // loop_footer_branch
      %14 = sbr.rel target = $region3
    $region8: #{tpu_custom_call.1} parent=1 // loop_exit
      _
    %331 = vsyncpa [#allocation9], 1
    %s332 = scalar_lea.sflag [#allocation9], 1
    %333 = vsyncpa %s332, 1
    %334 = vsyncpa [#allocation12], 1
    %s335 = scalar_lea.sflag [#allocation12], 1
    %336 = vsyncpa %s335, 1
    %337 = vsyncpa [#allocation10], 1
    %s338 = scalar_lea.sflag [#allocation10], 1
    %339 = vsyncpa %s338, 1

</llo_original>
